<compile_context>
chip_gen: v5e
topology: v5e:2x2
jax: 0.10.0
libtpu: 0.0.40
codegen_flags: <defaults>
</compile_context>

<pallas_src>
import jax
import jax.numpy as jnp
from jax import lax
from jax.experimental import pallas as pl
from jax.experimental.pallas import tpu as pltpu

EPS = 1e-5  # nn.BatchNorm2d default eps


def _round_up(n, m):
    return (n + m - 1) // m * m


def _pick_tile(n, cap):
    """Largest tile <= cap that divides n and keeps the sublane dim 8-aligned."""
    for t in range(min(cap, n), 0, -1):
        if n % t == 0 and (t % 8 == 0 or t == n):
            return t
    return n


# ---------------- Pass 1: conv matmul -> partial BN statistics only ----------
def conv_stats_kernel(p_ref, w_ref, st_ref):
    # (TP1, Kpad) bf16 @ (Kpad, Cpad) bf16 -> f32 accum on the MXU.
    y = jnp.dot(p_ref[...], w_ref[...], preferred_element_type=jnp.float32)
    # Single-pass per-tile statistics: sum and sum-of-squares per channel.
    st_ref[0, 0:1, :] = jnp.sum(y, axis=0, keepdims=True)
    st_ref[0, 1:2, :] = jnp.sum(y * y, axis=0, keepdims=True)


# -------- Pass 2: recomputed conv + BN + ReLU + fused 2x2 max-pool -----------
def conv_bn_relu_pool_kernel(p4_ref, w_ref, ss_ref, o_ref):
    scale = ss_ref[0:1, :]                       # (1, Cpad) f32
    shift = ss_ref[1:2, :]
    w = w_ref[...]

    def window(q):
        # Rows are ordered (pool_pos, n, ph, pw): slab q is pool-window pos q.
        y = jnp.dot(p4_ref[q], w, preferred_element_type=jnp.float32)
        return jnp.maximum(y * scale + shift, 0.0)

    # 2x2 max-pool == elementwise 4-way max over the 4 aligned slabs.
    o_ref[...] = jnp.maximum(jnp.maximum(window(0), window(1)),
                             jnp.maximum(window(2), window(3)))


def layer_cnn_forward(x_nchw, w_oihw, bias, gamma, beta, *, stride=1, padding=1, pool=2):
    del bias  # conv bias is exactly cancelled by training-mode BN mean subtraction
    N, Cin, H, W = x_nchw.shape
    Cout, _, KH, KW = w_oihw.shape
    OH = (H + 2 * padding - KH) // stride + 1
    OW = (W + 2 * padding - KW) // stride + 1
    # TODO(synk): generalize the fused pool beyond pooling_size=2 / even conv output dims.
    assert pool == 2 and OH % 2 == 0 and OW % 2 == 0
    PH, PW = OH // 2, OW // 2
    K = Cin * KH * KW
    Pq = N * PH * PW                 # pooled output positions
    Ptot = 4 * Pq                    # conv output positions (= N*OH*OW)
    Kpad = _round_up(K, 128)
    Cpad = _round_up(Cout, 128)

    # ---- glue: im2col, NCHW -> (N, OH, OW, Cin*KH*KW) ----
    # TODO(synk): for non-toy sizes, replace im2col with KH*KW accumulated
    # shifted matmuls (extra grid axis + VMEM accumulator) to avoid the 9x
    # input duplication in HBM.
    xp = jnp.pad(x_nchw, ((0, 0), (0, 0), (padding, padding), (padding, padding)))
    taps = [xp[:, :, ki:ki + stride * OH:stride, kj:kj + stride * OW:stride]
            for ki in range(KH) for kj in range(KW)]
    patches = (jnp.stack(taps, axis=0)
               .reshape(KH, KW, N, Cin, OH, OW)
               .transpose(2, 4, 5, 3, 0, 1)          # (N, OH, OW, Cin, KH, KW)
               .reshape(N, OH, OW, K))
    # Reorder rows to (pool_pos, n, ph, pw) so the pool fuses into pass 2.
    patches = (patches.reshape(N, PH, 2, PW, 2, K)
               .transpose(2, 4, 0, 1, 3, 5)          # (a, b, N, PH, PW, K)
               .reshape(Ptot, K))
    patches = jnp.pad(patches, ((0, 0), (0, Kpad - K))).astype(jnp.bfloat16)
    w2d = jnp.pad(w_oihw.reshape(Cout, K).T,
                  ((0, Kpad - K), (0, Cpad - Cout))).astype(jnp.bfloat16)

    cparams = pltpu.CompilerParams(dimension_semantics=("parallel",),
                                   vmem_limit_bytes=32 * 1024 * 1024)

    # ---- pass 1: per-tile partial stats (no activation writeback) ----
    TP1 = _pick_tile(Ptot, 512)
    n_t1 = Ptot // TP1
    partial = pl.pallas_call(
        conv_stats_kernel,
        out_shape=jax.ShapeDtypeStruct((n_t1, 2, Cpad), jnp.float32),
        grid=(n_t1,),
        in_specs=[pl.BlockSpec((TP1, Kpad), lambda i: (i, 0)),
                  pl.BlockSpec((Kpad, Cpad), lambda i: (0, 0))],
        out_specs=pl.BlockSpec((1, 2, Cpad), lambda i: (i, 0, 0)),
        compiler_params=cparams,
        cost_estimate=pl.CostEstimate(
            flops=2 * Ptot * Kpad * Cpad,
            transcendentals=0,
            bytes_accessed=(Ptot * Kpad * 2 + n_t1 * Kpad * Cpad * 2
                            + n_t1 * 2 * Cpad * 4)),
    )(patches, w2d)

    # ---- tiny glue: fold partial stats into per-channel scale/shift ----
    stats = jnp.sum(partial, axis=0)                       # (2, Cpad)
    count = jnp.float32(N * OH * OW)
    mean = stats[0] / count
    var = jnp.maximum(stats[1] / count - mean * mean, 0.0)
    inv = lax.rsqrt(var + EPS)
    gpad = jnp.pad(gamma.astype(jnp.float32), (0, Cpad - Cout))
    bpad = jnp.pad(beta.astype(jnp.float32), (0, Cpad - Cout))
    scale = gpad * inv
    shift = bpad - mean * scale
    scale_shift = jnp.stack([scale, shift], axis=0)        # (2, Cpad)

    # ---- pass 2: recomputed conv + BN + ReLU + fused 2x2 max-pool ----
    patches4 = patches.reshape(4, Pq, Kpad)                # pure metadata reshape
    TPq = _pick_tile(Pq, 256)
    n_t2 = Pq // TPq
    pooled = pl.pallas_call(
        conv_bn_relu_pool_kernel,
        out_shape=jax.ShapeDtypeStruct((Pq, Cpad), jnp.float32),
        grid=(n_t2,),
        in_specs=[pl.BlockSpec((4, TPq, Kpad), lambda i: (0, i, 0)),
                  pl.BlockSpec((Kpad, Cpad), lambda i: (0, 0)),
                  pl.BlockSpec((2, Cpad), lambda i: (0, 0))],
        out_specs=pl.BlockSpec((TPq, Cpad), lambda i: (i, 0)),
        compiler_params=cparams,
        cost_estimate=pl.CostEstimate(
            flops=2 * Ptot * Kpad * Cpad + 8 * Pq * Cpad,
            transcendentals=0,
            bytes_accessed=(Ptot * Kpad * 2
                            + n_t2 * (Kpad * Cpad * 2 + 2 * Cpad * 4)
                            + Pq * Cpad * 4)),
    )(patches4, w2d, scale_shift)

    # ---- glue: back to NCHW, drop channel padding ----
    return pooled.reshape(N, PH, PW, Cpad)[:, :, :, :Cout].transpose(0, 3, 1, 2)


def reference(x, w, b, gamma, beta):
    """Plain-JAX reference matching the PyTorch forward (training-mode BN)."""
    y = lax.conv_general_dilated(x, w, (1, 1), ((1, 1), (1, 1)),
                                 dimension_numbers=('NCHW', 'OIHW', 'NCHW'))
    y = y + b.reshape(1, -1, 1, 1)
    mean = y.mean(axis=(0, 2, 3), keepdims=True)
    var = ((y - mean) ** 2).mean(axis=(0, 2, 3), keepdims=True)
    y = (y - mean) / jnp.sqrt(var + EPS) * gamma.reshape(1, -1, 1, 1) + beta.reshape(1, -1, 1, 1)
    y = jnp.maximum(y, 0.0)
    return lax.reduce_window(y, -jnp.inf, lax.max, (1, 1, 2, 2), (1, 1, 2, 2), 'VALID')


if __name__ == "__main__":
    key = jax.random.PRNGKey(0)
    k1, k2, k3 = jax.random.split(key, 3)

    # LayerCNN(in_channel=4, out_channel=8, kernel_size=3, stride=1, padding=1, pooling_size=2)
    N, Cin, H, W = 2, 4, 16, 16
    Cout, KH, KW = 8, 3, 3

    x = jax.random.normal(k1, (N, Cin, H, W), jnp.float32)
    bound = 1.0 / (Cin * KH * KW) ** 0.5                   # Conv2d default init range
    w = jax.random.uniform(k2, (Cout, Cin, KH, KW), jnp.float32, -bound, bound)
    b = jax.random.uniform(k3, (Cout,), jnp.float32, -bound, bound)
    gamma = jnp.ones((Cout,), jnp.float32)                 # BatchNorm2d default affine params
    beta = jnp.zeros((Cout,), jnp.float32)

    fwd = jax.jit(layer_cnn_forward)
    out = jax.block_until_ready(fwd(x, w, b, gamma, beta))

    ref = reference(x, w, b, gamma, beta)
    assert out.shape == ref.shape == (N, Cout, H // 2, W // 2), (out.shape, ref.shape)
    assert jnp.allclose(out, ref, rtol=5e-2, atol=5e-2), float(jnp.max(jnp.abs(out - ref)))

    print("KERNEL_OK")
</pallas_src>

<mosaic_0001>
module attributes {stable_mosaic.version = 11 : i64} {
  func.func @conv_stats_kernel(%arg0: i32, %arg1: memref<512x128xbf16, #tpu.memory_space<vmem>>, %arg2: memref<128x128xbf16, #tpu.memory_space<vmem>>, %arg3: memref<1x2x128xf32, #tpu.memory_space<vmem>>) attributes {dimension_semantics = [#tpu.dimension_semantics<parallel>], iteration_bounds = array<i64: 1>, scalar_prefetch = 0 : i64, scratch_operands = 0 : i64, tpu.core_type = #tpu.core_type<tc>, window_params = [{transform_indices = @transform_0, window_bounds = array<i64: 512, 128>}, {pipeline_mode = #tpu.pipeline_mode<synchronous>, transform_indices = @transform_1, window_bounds = array<i64: 128, 128>}, {transform_indices = @transform_2, window_bounds = array<i64: 1, 2, 128>}]} {
    %c0 = arith.constant 0 : index
    %c0_0 = arith.constant 0 : index
    %0 = vector.load %arg1[%c0, %c0_0] : memref<512x128xbf16, #tpu.memory_space<vmem>>, vector<512x128xbf16>
    %c0_1 = arith.constant 0 : index
    %c0_2 = arith.constant 0 : index
    %1 = vector.load %arg2[%c0_1, %c0_2] : memref<128x128xbf16, #tpu.memory_space<vmem>>, vector<128x128xbf16>
    %cst = arith.constant dense<0.000000e+00> : vector<512x128xf32>
    %2 = tpu.matmul %0, %1, %cst {dimension_numbers = #tpu.dot_dimension_numbers<[1], [0], [0], [1], [0, 0, 1, 1], [], []>} : vector<512x128xbf16>, vector<128x128xbf16>, vector<512x128xf32> -> vector<512x128xf32>
    %cst_3 = arith.constant dense<0.000000e+00> : vector<128xf32>
    %3 = vector.multi_reduction <add>, %2, %cst_3 [0] : vector<512x128xf32> to vector<128xf32>
    %4 = vector.shape_cast %3 : vector<128xf32> to vector<1x128xf32>
    %c0_4 = arith.constant 0 : index
    %c0_5 = arith.constant 0 : index
    %c0_6 = arith.constant 0 : index
    %5 = vector.load %arg3[%c0_4, %c0_5, %c0_6] : memref<1x2x128xf32, #tpu.memory_space<vmem>>, vector<1x1x128xf32>
    %6 = vector.shape_cast %5 : vector<1x1x128xf32> to vector<1x128xf32>
    %7 = vector.shape_cast %4 : vector<1x128xf32> to vector<1x1x128xf32>
    tpu.vector_store %arg3[%c0_4, %c0_5, %c0_6], %7 {strides = array<i32>} : memref<1x2x128xf32, #tpu.memory_space<vmem>>, vector<1x1x128xf32>,
    %8 = arith.mulf %2, %2 : vector<512x128xf32>
    %cst_7 = arith.constant dense<0.000000e+00> : vector<128xf32>
    %9 = vector.multi_reduction <add>, %8, %cst_7 [0] : vector<512x128xf32> to vector<128xf32>
    %10 = vector.shape_cast %9 : vector<128xf32> to vector<1x128xf32>
    %c0_8 = arith.constant 0 : index
    %c1 = arith.constant 1 : index
    %c0_9 = arith.constant 0 : index
    %11 = vector.load %arg3[%c0_8, %c1, %c0_9] : memref<1x2x128xf32, #tpu.memory_space<vmem>>, vector<1x1x128xf32>
    %12 = vector.shape_cast %11 : vector<1x1x128xf32> to vector<1x128xf32>
    %13 = vector.shape_cast %10 : vector<1x128xf32> to vector<1x1x128xf32>
    tpu.vector_store %arg3[%c0_8, %c1, %c0_9], %13 {strides = array<i32>} : memref<1x2x128xf32, #tpu.memory_space<vmem>>, vector<1x1x128xf32>,
    return
  }
  func.func @transform_0(%arg0: i32) -> (i32, i32) {
    %c0_i32 = arith.constant 0 : i32
    %c0_i32_0 = arith.constant 0 : i32
    return %arg0, %c0_i32 : i32, i32
  }
  func.func @transform_1(%arg0: i32) -> (i32, i32) {
    %c0_i32 = arith.constant 0 : i32
    %c0_i32_0 = arith.constant 0 : i32
    %c0_i32_1 = arith.constant 0 : i32
    return %c0_i32, %c0_i32_0 : i32, i32
  }
  func.func @transform_2(%arg0: i32) -> (i32, i32, i32) {
    %c0_i32 = arith.constant 0 : i32
    %c0_i32_0 = arith.constant 0 : i32
    %c0_i32_1 = arith.constant 0 : i32
    return %arg0, %c0_i32, %c0_i32_0 : i32, i32, i32
  }
}

module attributes {stable_mosaic.version = 11 : i64} {
  func.func @conv_bn_relu_pool_kernel(%arg0: i32, %arg1: memref<4x128x128xbf16, #tpu.memory_space<vmem>>, %arg2: memref<128x128xbf16, #tpu.memory_space<vmem>>, %arg3: memref<2x128xf32, #tpu.memory_space<vmem>>, %arg4: memref<128x128xf32, #tpu.memory_space<vmem>>) attributes {dimension_semantics = [#tpu.dimension_semantics<parallel>], iteration_bounds = array<i64: 1>, scalar_prefetch = 0 : i64, scratch_operands = 0 : i64, tpu.core_type = #tpu.core_type<tc>, window_params = [{transform_indices = @transform_0, window_bounds = array<i64: 4, 128, 128>}, {pipeline_mode = #tpu.pipeline_mode<synchronous>, transform_indices = @transform_1, window_bounds = array<i64: 128, 128>}, {pipeline_mode = #tpu.pipeline_mode<synchronous>, transform_indices = @transform_2, window_bounds = array<i64: 2, 128>}, {transform_indices = @transform_3, window_bounds = array<i64: 128, 128>}]} {
    %c0 = arith.constant 0 : index
    %c0_0 = arith.constant 0 : index
    %0 = vector.load %arg3[%c0, %c0_0] : memref<2x128xf32, #tpu.memory_space<vmem>>, vector<1x128xf32>
    %c1 = arith.constant 1 : index
    %c0_1 = arith.constant 0 : index
    %1 = vector.load %arg3[%c1, %c0_1] : memref<2x128xf32, #tpu.memory_space<vmem>>, vector<1x128xf32>
    %c0_2 = arith.constant 0 : index
    %c0_3 = arith.constant 0 : index
    %2 = vector.load %arg2[%c0_2, %c0_3] : memref<128x128xbf16, #tpu.memory_space<vmem>>, vector<128x128xbf16>
    %c0_4 = arith.constant 0 : index
    %c0_5 = arith.constant 0 : index
    %c0_6 = arith.constant 0 : index
    %3 = vector.load %arg1[%c0_4, %c0_5, %c0_6] : memref<4x128x128xbf16, #tpu.memory_space<vmem>>, vector<1x128x128xbf16>
    %4 = vector.shape_cast %3 : vector<1x128x128xbf16> to vector<128x128xbf16>
    %cst = arith.constant dense<0.000000e+00> : vector<128x128xf32>
    %5 = tpu.matmul %4, %2, %cst {dimension_numbers = #tpu.dot_dimension_numbers<[1], [0], [0], [1], [0, 0, 1, 1], [], []>} : vector<128x128xbf16>, vector<128x128xbf16>, vector<128x128xf32> -> vector<128x128xf32>
    %6 = vector.broadcast %0 : vector<1x128xf32> to vector<128x128xf32>
    %7 = arith.mulf %5, %6 : vector<128x128xf32>
    %8 = vector.broadcast %1 : vector<1x128xf32> to vector<128x128xf32>
    %9 = arith.addf %7, %8 : vector<128x128xf32>
    %cst_7 = arith.constant 0.000000e+00 : f32
    %10 = vector.broadcast %cst_7 : f32 to vector<128x128xf32>
    %11 = arith.maximumf %9, %10 : vector<128x128xf32>
    %c1_8 = arith.constant 1 : index
    %c0_9 = arith.constant 0 : index
    %c0_10 = arith.constant 0 : index
    %12 = vector.load %arg1[%c1_8, %c0_9, %c0_10] : memref<4x128x128xbf16, #tpu.memory_space<vmem>>, vector<1x128x128xbf16>
    %13 = vector.shape_cast %12 : vector<1x128x128xbf16> to vector<128x128xbf16>
    %cst_11 = arith.constant dense<0.000000e+00> : vector<128x128xf32>
    %14 = tpu.matmul %13, %2, %cst_11 {dimension_numbers = #tpu.dot_dimension_numbers<[1], [0], [0], [1], [0, 0, 1, 1], [], []>} : vector<128x128xbf16>, vector<128x128xbf16>, vector<128x128xf32> -> vector<128x128xf32>
    %15 = vector.broadcast %0 : vector<1x128xf32> to vector<128x128xf32>
    %16 = arith.mulf %14, %15 : vector<128x128xf32>
    %17 = vector.broadcast %1 : vector<1x128xf32> to vector<128x128xf32>
    %18 = arith.addf %16, %17 : vector<128x128xf32>
    %cst_12 = arith.constant 0.000000e+00 : f32
    %19 = vector.broadcast %cst_12 : f32 to vector<128x128xf32>
    %20 = arith.maximumf %18, %19 : vector<128x128xf32>
    %21 = arith.maximumf %11, %20 : vector<128x128xf32>
    %c2 = arith.constant 2 : index
    %c0_13 = arith.constant 0 : index
    %c0_14 = arith.constant 0 : index
    %22 = vector.load %arg1[%c2, %c0_13, %c0_14] : memref<4x128x128xbf16, #tpu.memory_space<vmem>>, vector<1x128x128xbf16>
    %23 = vector.shape_cast %22 : vector<1x128x128xbf16> to vector<128x128xbf16>
    %cst_15 = arith.constant dense<0.000000e+00> : vector<128x128xf32>
    %24 = tpu.matmul %23, %2, %cst_15 {dimension_numbers = #tpu.dot_dimension_numbers<[1], [0], [0], [1], [0, 0, 1, 1], [], []>} : vector<128x128xbf16>, vector<128x128xbf16>, vector<128x128xf32> -> vector<128x128xf32>
    %25 = vector.broadcast %0 : vector<1x128xf32> to vector<128x128xf32>
    %26 = arith.mulf %24, %25 : vector<128x128xf32>
    %27 = vector.broadcast %1 : vector<1x128xf32> to vector<128x128xf32>
    %28 = arith.addf %26, %27 : vector<128x128xf32>
    %cst_16 = arith.constant 0.000000e+00 : f32
    %29 = vector.broadcast %cst_16 : f32 to vector<128x128xf32>
    %30 = arith.maximumf %28, %29 : vector<128x128xf32>
    %c3 = arith.constant 3 : index
    %c0_17 = arith.constant 0 : index
    %c0_18 = arith.constant 0 : index
    %31 = vector.load %arg1[%c3, %c0_17, %c0_18] : memref<4x128x128xbf16, #tpu.memory_space<vmem>>, vector<1x128x128xbf16>
    %32 = vector.shape_cast %31 : vector<1x128x128xbf16> to vector<128x128xbf16>
    %cst_19 = arith.constant dense<0.000000e+00> : vector<128x128xf32>
    %33 = tpu.matmul %32, %2, %cst_19 {dimension_numbers = #tpu.dot_dimension_numbers<[1], [0], [0], [1], [0, 0, 1, 1], [], []>} : vector<128x128xbf16>, vector<128x128xbf16>, vector<128x128xf32> -> vector<128x128xf32>
    %34 = vector.broadcast %0 : vector<1x128xf32> to vector<128x128xf32>
    %35 = arith.mulf %33, %34 : vector<128x128xf32>
    %36 = vector.broadcast %1 : vector<1x128xf32> to vector<128x128xf32>
    %37 = arith.addf %35, %36 : vector<128x128xf32>
    %cst_20 = arith.constant 0.000000e+00 : f32
    %38 = vector.broadcast %cst_20 : f32 to vector<128x128xf32>
    %39 = arith.maximumf %37, %38 : vector<128x128xf32>
    %40 = arith.maximumf %30, %39 : vector<128x128xf32>
    %41 = arith.maximumf %21, %40 : vector<128x128xf32>
    %c0_21 = arith.constant 0 : index
    %c0_22 = arith.constant 0 : index
    %42 = vector.load %arg4[%c0_21, %c0_22] : memref<128x128xf32, #tpu.memory_space<vmem>>, vector<128x128xf32>
    tpu.vector_store %arg4[%c0_21, %c0_22], %41 {strides = array<i32>} : memref<128x128xf32, #tpu.memory_space<vmem>>, vector<128x128xf32>,
    return
  }
  func.func @transform_0(%arg0: i32) -> (i32, i32, i32) {
    %c0_i32 = arith.constant 0 : i32
    %c0_i32_0 = arith.constant 0 : i32
    %c0_i32_1 = arith.constant 0 : i32
    return %c0_i32, %arg0, %c0_i32_0 : i32, i32, i32
  }
  func.func @transform_1(%arg0: i32) -> (i32, i32) {
    %c0_i32 = arith.constant 0 : i32
    %c0_i32_0 = arith.constant 0 : i32
    %c0_i32_1 = arith.constant 0 : i32
    return %c0_i32, %c0_i32_0 : i32, i32
  }
  func.func @transform_2(%arg0: i32) -> (i32, i32) {
    %c0_i32 = arith.constant 0 : i32
    %c0_i32_0 = arith.constant 0 : i32
    %c0_i32_1 = arith.constant 0 : i32
    return %c0_i32, %c0_i32_0 : i32, i32
  }
  func.func @transform_3(%arg0: i32) -> (i32, i32) {
    %c0_i32 = arith.constant 0 : i32
    %c0_i32_0 = arith.constant 0 : i32
    return %arg0, %c0_i32 : i32, i32
  }
}

</mosaic_0001>

<llo_original>
// kernel: layer_cnn_forward.2
$region0: #{layer_cnn_forward.2}
  #allocation0 [shape = 'u32[]', space=smem, size = 0x4, offset = 0x4, fixed_abs, tag = 'smem constant byte address 0x4 - core index']
  #allocation1 [shape = 'u32[72,128]{1,0:T(1,128)}', space=vmem, size = 0x9000, scoped, tag = 'internal scratch']
  %s0 = inlined_call_operand.vmem [shape: bf16[512,128], index: 0, kind: input, shape index: {}]
  %s1 = inlined_call_operand.vmem [shape: bf16[128,128], index: 1, kind: input, shape index: {}]
  %s2 = inlined_call_operand.vmem [shape: f32[1,2,128], index: 2, kind: output, shape index: {}]
  %s3 = sld [smem:[#allocation0]]
  $region18: #{layer_cnn_forward.2} parent=0
    _
  %s5 = ssub.s32 1, %s3
  %s6 = scalar_select 0, %s5, %s3
  // Predicated region
  $region2: #{layer_cnn_forward.2} parent=0 // pred_check
    _
  $region3: #{layer_cnn_forward.2} parent=0 // pred_check_branch
    %8 = sbr.rel (0) target = $region5
  $region4: #{layer_cnn_forward.2} parent=0 // pred_region
    _
  $region5: #{layer_cnn_forward.2} parent=0 // pred_fallthru
    _
  // Predicated region
  $region6: #{layer_cnn_forward.2} parent=0 // pred_check
    _
  $region7: #{layer_cnn_forward.2} parent=0 // pred_check_branch
    %10 = sbr.rel (0) target = $region9
  $region8: #{layer_cnn_forward.2} parent=0 // pred_region
    _
  $region9: #{layer_cnn_forward.2} parent=0 // pred_fallthru
    _
  %v11 = vld [vmem:[%s0] sm:$0xf]
  %v12 = vld [vmem:[%s0 + $0x4] sm:$0xf]
  %v13 = vld [vmem:[%s0 + $0x8] sm:$0xf]
  %v14 = vld [vmem:[%s0 + $0xc] sm:$0xf]
  %v15 = vld [vmem:[%s0 + $0x10] sm:$0xf]
  %v16 = vld [vmem:[%s0 + $0x14] sm:$0xf]
  %v17 = vld [vmem:[%s0 + $0x18] sm:$0xf]
  %v18 = vld [vmem:[%s0 + $0x1c] sm:$0xf]
  %v19 = vld [vmem:[%s0 + $0x20] sm:$0xf]
  %v20 = vld [vmem:[%s0 + $0x24] sm:$0xf]
  %v21 = vld [vmem:[%s0 + $0x28] sm:$0xf]
  %v22 = vld [vmem:[%s0 + $0x2c] sm:$0xf]
  %v23 = vld [vmem:[%s0 + $0x30] sm:$0xf]
  %v24 = vld [vmem:[%s0 + $0x34] sm:$0xf]
  %v25 = vld [vmem:[%s0 + $0x38] sm:$0xf]
  %v26 = vld [vmem:[%s0 + $0x3c] sm:$0xf]
  %v27 = vld [vmem:[%s0 + $0x40] sm:$0xf]
  %v28 = vld [vmem:[%s0 + $0x44] sm:$0xf]
  %v29 = vld [vmem:[%s0 + $0x48] sm:$0xf]
  %v30 = vld [vmem:[%s0 + $0x4c] sm:$0xf]
  %v31 = vld [vmem:[%s0 + $0x50] sm:$0xf]
  %v32 = vld [vmem:[%s0 + $0x54] sm:$0xf]
  %v33 = vld [vmem:[%s0 + $0x58] sm:$0xf]
  %v34 = vld [vmem:[%s0 + $0x5c] sm:$0xf]
  %v35 = vld [vmem:[%s0 + $0x60] sm:$0xf]
  %v36 = vld [vmem:[%s0 + $0x64] sm:$0xf]
  %v37 = vld [vmem:[%s0 + $0x68] sm:$0xf]
  %v38 = vld [vmem:[%s0 + $0x6c] sm:$0xf]
  %v39 = vld [vmem:[%s0 + $0x70] sm:$0xf]
  %v40 = vld [vmem:[%s0 + $0x74] sm:$0xf]
  %v41 = vld [vmem:[%s0 + $0x78] sm:$0xf]
  %v42 = vld [vmem:[%s0 + $0x7c] sm:$0xf]
  %v43 = vld [vmem:[%s0 + $0x80] sm:$0xf]
  %v44 = vld [vmem:[%s0 + $0x84] sm:$0xf]
  %v45 = vld [vmem:[%s0 + $0x88] sm:$0xf]
  %v46 = vld [vmem:[%s0 + $0x8c] sm:$0xf]
  %v47 = vld [vmem:[%s0 + $0x90] sm:$0xf]
  %v48 = vld [vmem:[%s0 + $0x94] sm:$0xf]
  %v49 = vld [vmem:[%s0 + $0x98] sm:$0xf]
  %v50 = vld [vmem:[%s0 + $0x9c] sm:$0xf]
  %v51 = vld [vmem:[%s0 + $0xa0] sm:$0xf]
  %v52 = vld [vmem:[%s0 + $0xa4] sm:$0xf]
  %v53 = vld [vmem:[%s0 + $0xa8] sm:$0xf]
  %v54 = vld [vmem:[%s0 + $0xac] sm:$0xf]
  %v55 = vld [vmem:[%s0 + $0xb0] sm:$0xf]
  %v56 = vld [vmem:[%s0 + $0xb4] sm:$0xf]
  %v57 = vld [vmem:[%s0 + $0xb8] sm:$0xf]
  %v58 = vld [vmem:[%s0 + $0xbc] sm:$0xf]
  %v59 = vld [vmem:[%s0 + $0xc0] sm:$0xf]
  %v60 = vld [vmem:[%s0 + $0xc4] sm:$0xf]
  %v61 = vld [vmem:[%s0 + $0xc8] sm:$0xf]
  %v62 = vld [vmem:[%s0 + $0xcc] sm:$0xf]
  %v63 = vld [vmem:[%s0 + $0xd0] sm:$0xf]
  %v64 = vld [vmem:[%s0 + $0xd4] sm:$0xf]
  %v65 = vld [vmem:[%s0 + $0xd8] sm:$0xf]
  %v66 = vld [vmem:[%s0 + $0xdc] sm:$0xf]
  %v67 = vld [vmem:[%s0 + $0xe0] sm:$0xf]
  %v68 = vld [vmem:[%s0 + $0xe4] sm:$0xf]
  %v69 = vld [vmem:[%s0 + $0xe8] sm:$0xf]
  %v70 = vld [vmem:[%s0 + $0xec] sm:$0xf]
  %v71 = vld [vmem:[%s0 + $0xf0] sm:$0xf]
  %v72 = vld [vmem:[%s0 + $0xf4] sm:$0xf]
  %v73 = vld [vmem:[%s0 + $0xf8] sm:$0xf]
  %v74 = vld [vmem:[%s0 + $0xfc] sm:$0xf]
  %v75 = vld [vmem:[%s1] sm:$0xf]
  %v76 = vld [vmem:[%s1 + $0x4] sm:$0xf]
  %v77 = vld [vmem:[%s1 + $0x8] sm:$0xf]
  %v78 = vld [vmem:[%s1 + $0xc] sm:$0xf]
  %v79 = vld [vmem:[%s1 + $0x10] sm:$0xf]
  %v80 = vld [vmem:[%s1 + $0x14] sm:$0xf]
  %v81 = vld [vmem:[%s1 + $0x18] sm:$0xf]
  %v82 = vld [vmem:[%s1 + $0x1c] sm:$0xf]
  %v83 = vld [vmem:[%s1 + $0x20] sm:$0xf]
  %v84 = vld [vmem:[%s1 + $0x24] sm:$0xf]
  %v85 = vld [vmem:[%s1 + $0x28] sm:$0xf]
  %v86 = vld [vmem:[%s1 + $0x2c] sm:$0xf]
  %v87 = vld [vmem:[%s1 + $0x30] sm:$0xf]
  %v88 = vld [vmem:[%s1 + $0x34] sm:$0xf]
  %v89 = vld [vmem:[%s1 + $0x38] sm:$0xf]
  %v90 = vld [vmem:[%s1 + $0x3c] sm:$0xf]
  %v155 = vunpack.c.l.b16 %v11
  %v156 = vunpack.c.l.b16 %v12
  %v157 = vunpack.c.l.b16 %v13
  %v158 = vunpack.c.l.b16 %v14
  %v159 = vunpack.c.l.b16 %v15
  %v160 = vunpack.c.l.b16 %v16
  %v161 = vunpack.c.l.b16 %v17
  %v162 = vunpack.c.l.b16 %v18
  %v163 = vunpack.c.l.b16 %v19
  %v164 = vunpack.c.l.b16 %v20
  %v165 = vunpack.c.l.b16 %v21
  %v166 = vunpack.c.l.b16 %v22
  %v167 = vunpack.c.l.b16 %v23
  %v168 = vunpack.c.l.b16 %v24
  %v169 = vunpack.c.l.b16 %v25
  %v170 = vunpack.c.l.b16 %v26
  %v171 = vunpack.c.l.b16 %v27
  %v172 = vunpack.c.l.b16 %v28
  %v173 = vunpack.c.l.b16 %v29
  %v174 = vunpack.c.l.b16 %v30
  %v175 = vunpack.c.l.b16 %v31
  %v176 = vunpack.c.l.b16 %v32
  %v177 = vunpack.c.l.b16 %v33
  %v178 = vunpack.c.l.b16 %v34
  %v179 = vunpack.c.l.b16 %v35
  %v180 = vunpack.c.l.b16 %v36
  %v181 = vunpack.c.l.b16 %v37
  %v182 = vunpack.c.l.b16 %v38
  %v183 = vunpack.c.l.b16 %v39
  %v184 = vunpack.c.l.b16 %v40
  %v185 = vunpack.c.l.b16 %v41
  %v186 = vunpack.c.l.b16 %v42
  %v187 = vunpack.c.l.b16 %v43
  %v188 = vunpack.c.l.b16 %v44
  %v189 = vunpack.c.l.b16 %v45
  %v190 = vunpack.c.l.b16 %v46
  %v191 = vunpack.c.l.b16 %v47
  %v192 = vunpack.c.l.b16 %v48
  %v193 = vunpack.c.l.b16 %v49
  %v194 = vunpack.c.l.b16 %v50
  %v195 = vunpack.c.l.b16 %v51
  %v196 = vunpack.c.l.b16 %v52
  %v197 = vunpack.c.l.b16 %v53
  %v198 = vunpack.c.l.b16 %v54
  %v199 = vunpack.c.l.b16 %v55
  %v200 = vunpack.c.l.b16 %v56
  %v201 = vunpack.c.l.b16 %v57
  %v202 = vunpack.c.l.b16 %v58
  %v203 = vunpack.c.l.b16 %v59
  %v204 = vunpack.c.l.b16 %v60
  %v205 = vunpack.c.l.b16 %v61
  %v206 = vunpack.c.l.b16 %v62
  %v207 = vunpack.c.l.b16 %v63
  %v208 = vunpack.c.l.b16 %v64
  %v209 = vunpack.c.l.b16 %v65
  %v210 = vunpack.c.l.b16 %v66
  %v211 = vunpack.c.l.b16 %v67
  %v212 = vunpack.c.l.b16 %v68
  %v213 = vunpack.c.l.b16 %v69
  %v214 = vunpack.c.l.b16 %v70
  %v215 = vunpack.c.l.b16 %v71
  %v216 = vunpack.c.l.b16 %v72
  %v217 = vunpack.c.l.b16 %v73
  %v218 = vunpack.c.l.b16 %v74
  %v219 = vpack.c.b16 %v156, %v155
  %v220 = vpack.c.b16 %v158, %v157
  %v221 = vpack.c.b16 %v160, %v159
  %v222 = vpack.c.b16 %v162, %v161
  %v223 = vpack.c.b16 %v164, %v163
  %v224 = vpack.c.b16 %v166, %v165
  %v225 = vpack.c.b16 %v168, %v167
  %v226 = vpack.c.b16 %v170, %v169
  %v227 = vpack.c.b16 %v172, %v171
  %v228 = vpack.c.b16 %v174, %v173
  %v229 = vpack.c.b16 %v176, %v175
  %v230 = vpack.c.b16 %v178, %v177
  %v231 = vpack.c.b16 %v180, %v179
  %v232 = vpack.c.b16 %v182, %v181
  %v233 = vpack.c.b16 %v184, %v183
  %v234 = vpack.c.b16 %v186, %v185
  %v235 = vpack.c.b16 %v188, %v187
  %v236 = vpack.c.b16 %v190, %v189
  %v237 = vpack.c.b16 %v192, %v191
  %v238 = vpack.c.b16 %v194, %v193
  %v239 = vpack.c.b16 %v196, %v195
  %v240 = vpack.c.b16 %v198, %v197
  %v241 = vpack.c.b16 %v200, %v199
  %v242 = vpack.c.b16 %v202, %v201
  %v243 = vpack.c.b16 %v204, %v203
  %v244 = vpack.c.b16 %v206, %v205
  %v245 = vpack.c.b16 %v208, %v207
  %v246 = vpack.c.b16 %v210, %v209
  %v247 = vpack.c.b16 %v212, %v211
  %v248 = vpack.c.b16 %v214, %v213
  %v249 = vpack.c.b16 %v216, %v215
  %v250 = vpack.c.b16 %v218, %v217
  %v299 = vunpack.c.l.b16 %v75
  %v300 = vunpack.c.l.b16 %v76
  %v301 = vunpack.c.l.b16 %v77
  %v302 = vunpack.c.l.b16 %v78
  %v303 = vunpack.c.l.b16 %v79
  %v304 = vunpack.c.l.b16 %v80
  %v305 = vunpack.c.l.b16 %v81
  %v306 = vunpack.c.l.b16 %v82
  %v307 = vunpack.c.l.b16 %v83
  %v308 = vunpack.c.l.b16 %v84
  %v309 = vunpack.c.l.b16 %v85
  %v310 = vunpack.c.l.b16 %v86
  %v311 = vunpack.c.l.b16 %v87
  %v312 = vunpack.c.l.b16 %v88
  %v313 = vunpack.c.l.b16 %v89
  %v314 = vunpack.c.l.b16 %v90
  %v315 = vpack.c.b16 %v300, %v299
  %v316 = vpack.c.b16 %v302, %v301
  %v317 = vpack.c.b16 %v304, %v303
  %v318 = vpack.c.b16 %v306, %v305
  %v319 = vpack.c.b16 %v308, %v307
  %v320 = vpack.c.b16 %v310, %v309
  %v321 = vpack.c.b16 %v312, %v311
  %v322 = vpack.c.b16 %v314, %v313
  %331 = vmatpush.bf16.msra.mxu0 %v322
  %332 = vmatpush.bf16.msra.mxu0 %v321
  %333 = vmatpush.bf16.msra.mxu0 %v320
  %334 = vmatpush.bf16.msra.mxu0 %v319
  %335 = vmatpush.bf16.msra.mxu0 %v318
  %336 = vmatpush.bf16.msra.mxu0 %v317
  %337 = vmatpush.bf16.msra.mxu0 %v316
  %338 = vmatpush.bf16.msra.mxu0 %v315
  %339 = vmatmul.bf16.gmra.mxu0 %v219
  %v340 = vpop.f32.mrf.mxu0
  %v341 = vadd.f32 0.0, %v340
  %v342 = vpop.f32.mrf.mxu0
  %v343 = vadd.f32 0.0, %v342
  %344 = vmatmul.bf16.gmra.mxu0 %v220
  %v345 = vpop.f32.mrf.mxu0
  %v346 = vadd.f32 0.0, %v345
  %v347 = vpop.f32.mrf.mxu0
  %v348 = vadd.f32 0.0, %v347
  %349 = vmatmul.bf16.gmra.mxu0 %v221
  %v350 = vpop.f32.mrf.mxu0
  %v351 = vadd.f32 0.0, %v350
  %v352 = vpop.f32.mrf.mxu0
  %v353 = vadd.f32 0.0, %v352
  %354 = vmatmul.bf16.gmra.mxu0 %v222
  %v355 = vpop.f32.mrf.mxu0
  %v356 = vadd.f32 0.0, %v355
  %v357 = vpop.f32.mrf.mxu0
  %v358 = vadd.f32 0.0, %v357
  %359 = vmatmul.bf16.gmra.mxu0 %v223
  %v360 = vpop.f32.mrf.mxu0
  %v361 = vadd.f32 0.0, %v360
  %v362 = vpop.f32.mrf.mxu0
  %v363 = vadd.f32 0.0, %v362
  %364 = vmatmul.bf16.gmra.mxu0 %v224
  %v365 = vpop.f32.mrf.mxu0
  %v366 = vadd.f32 0.0, %v365
  %v367 = vpop.f32.mrf.mxu0
  %v368 = vadd.f32 0.0, %v367
  %369 = vmatmul.bf16.gmra.mxu0 %v225
  %v370 = vpop.f32.mrf.mxu0
  %v371 = vadd.f32 0.0, %v370
  %v372 = vpop.f32.mrf.mxu0
  %v373 = vadd.f32 0.0, %v372
  %374 = vmatmul.bf16.gmra.mxu0 %v226
  %v375 = vpop.f32.mrf.mxu0
  %v376 = vadd.f32 0.0, %v375
  %v377 = vpop.f32.mrf.mxu0
  %v378 = vadd.f32 0.0, %v377
  %379 = vmatmul.bf16.gmra.mxu0 %v227
  %v380 = vpop.f32.mrf.mxu0
  %v381 = vadd.f32 0.0, %v380
  %v382 = vpop.f32.mrf.mxu0
  %v383 = vadd.f32 0.0, %v382
  %384 = vmatmul.bf16.gmra.mxu0 %v228
  %v385 = vpop.f32.mrf.mxu0
  %v386 = vadd.f32 0.0, %v385
  %v387 = vpop.f32.mrf.mxu0
  %v388 = vadd.f32 0.0, %v387
  %389 = vmatmul.bf16.gmra.mxu0 %v229
  %v390 = vpop.f32.mrf.mxu0
  %v391 = vadd.f32 0.0, %v390
  %v392 = vpop.f32.mrf.mxu0
  %v393 = vadd.f32 0.0, %v392
  %394 = vmatmul.bf16.gmra.mxu0 %v230
  %v395 = vpop.f32.mrf.mxu0
  %v396 = vadd.f32 0.0, %v395
  %v397 = vpop.f32.mrf.mxu0
  %v398 = vadd.f32 0.0, %v397
  %399 = vmatmul.bf16.gmra.mxu0 %v231
  %v400 = vpop.f32.mrf.mxu0
  %v401 = vadd.f32 0.0, %v400
  %v402 = vpop.f32.mrf.mxu0
  %v403 = vadd.f32 0.0, %v402
  %404 = vmatmul.bf16.gmra.mxu0 %v232
  %v405 = vpop.f32.mrf.mxu0
  %v406 = vadd.f32 0.0, %v405
  %v407 = vpop.f32.mrf.mxu0
  %v408 = vadd.f32 0.0, %v407
  %409 = vmatmul.bf16.gmra.mxu0 %v233
  %v410 = vpop.f32.mrf.mxu0
  %v411 = vadd.f32 0.0, %v410
  %v412 = vpop.f32.mrf.mxu0
  %v413 = vadd.f32 0.0, %v412
  %414 = vmatmul.bf16.gmra.mxu0 %v234
  %v415 = vpop.f32.mrf.mxu0
  %v416 = vadd.f32 0.0, %v415
  %v417 = vpop.f32.mrf.mxu0
  %v418 = vadd.f32 0.0, %v417
  %419 = vmatmul.bf16.gmra.mxu0 %v235
  %v420 = vpop.f32.mrf.mxu0
  %v421 = vadd.f32 0.0, %v420
  %v422 = vpop.f32.mrf.mxu0
  %v423 = vadd.f32 0.0, %v422
  %424 = vmatmul.bf16.gmra.mxu0 %v236
  %v425 = vpop.f32.mrf.mxu0
  %v426 = vadd.f32 0.0, %v425
  %v427 = vpop.f32.mrf.mxu0
  %v428 = vadd.f32 0.0, %v427
  %429 = vmatmul.bf16.gmra.mxu0 %v237
  %v430 = vpop.f32.mrf.mxu0
  %v431 = vadd.f32 0.0, %v430
  %v432 = vpop.f32.mrf.mxu0
  %v433 = vadd.f32 0.0, %v432
  %434 = vmatmul.bf16.gmra.mxu0 %v238
  %v435 = vpop.f32.mrf.mxu0
  %v436 = vadd.f32 0.0, %v435
  %v437 = vpop.f32.mrf.mxu0
  %v438 = vadd.f32 0.0, %v437
  %439 = vmatmul.bf16.gmra.mxu0 %v239
  %v440 = vpop.f32.mrf.mxu0
  %v441 = vadd.f32 0.0, %v440
  %v442 = vpop.f32.mrf.mxu0
  %v443 = vadd.f32 0.0, %v442
  %444 = vmatmul.bf16.gmra.mxu0 %v240
  %v445 = vpop.f32.mrf.mxu0
  %v446 = vadd.f32 0.0, %v445
  %v447 = vpop.f32.mrf.mxu0
  %v448 = vadd.f32 0.0, %v447
  %449 = vmatmul.bf16.gmra.mxu0 %v241
  %v450 = vpop.f32.mrf.mxu0
  %v451 = vadd.f32 0.0, %v450
  %v452 = vpop.f32.mrf.mxu0
  %v453 = vadd.f32 0.0, %v452
  %454 = vmatmul.bf16.gmra.mxu0 %v242
  %v455 = vpop.f32.mrf.mxu0
  %v456 = vadd.f32 0.0, %v455
  %v457 = vpop.f32.mrf.mxu0
  %v458 = vadd.f32 0.0, %v457
  %459 = vmatmul.bf16.gmra.mxu0 %v243
  %v460 = vpop.f32.mrf.mxu0
  %v461 = vadd.f32 0.0, %v460
  %v462 = vpop.f32.mrf.mxu0
  %v463 = vadd.f32 0.0, %v462
  %464 = vmatmul.bf16.gmra.mxu0 %v244
  %v465 = vpop.f32.mrf.mxu0
  %v466 = vadd.f32 0.0, %v465
  %v467 = vpop.f32.mrf.mxu0
  %v468 = vadd.f32 0.0, %v467
  %469 = vmatmul.bf16.gmra.mxu0 %v245
  %v470 = vpop.f32.mrf.mxu0
  %v471 = vadd.f32 0.0, %v470
  %v472 = vpop.f32.mrf.mxu0
  %v473 = vadd.f32 0.0, %v472
  %474 = vmatmul.bf16.gmra.mxu0 %v246
  %v475 = vpop.f32.mrf.mxu0
  %v476 = vadd.f32 0.0, %v475
  %v477 = vpop.f32.mrf.mxu0
  %v478 = vadd.f32 0.0, %v477
  %479 = vmatmul.bf16.gmra.mxu0 %v247
  %v480 = vpop.f32.mrf.mxu0
  %v481 = vadd.f32 0.0, %v480
  %v482 = vpop.f32.mrf.mxu0
  %v483 = vadd.f32 0.0, %v482
  %484 = vmatmul.bf16.gmra.mxu0 %v248
  %v485 = vpop.f32.mrf.mxu0
  %v486 = vadd.f32 0.0, %v485
  %v487 = vpop.f32.mrf.mxu0
  %v488 = vadd.f32 0.0, %v487
  %489 = vmatmul.bf16.gmra.mxu0 %v249
  %v490 = vpop.f32.mrf.mxu0
  %v491 = vadd.f32 0.0, %v490
  %v492 = vpop.f32.mrf.mxu0
  %v493 = vadd.f32 0.0, %v492
  %494 = vmatmul.bf16.gmra.mxu0 %v250
  %v495 = vpop.f32.mrf.mxu0
  %v496 = vadd.f32 0.0, %v495
  %v497 = vpop.f32.mrf.mxu0
  %v498 = vadd.f32 0.0, %v497
  %499 = vdwg.mxu0
  %v500 = vadd.f32 %v341, %v343
  %v501 = vadd.f32 %v500, %v346
  %v502 = vadd.f32 %v501, %v348
  %v503 = vadd.f32 %v502, %v351
  %v504 = vadd.f32 %v503, %v353
  %v505 = vadd.f32 %v504, %v356
  %v506 = vadd.f32 %v505, %v358
  %v507 = vadd.f32 %v506, %v361
  %v508 = vadd.f32 %v507, %v363
  %v509 = vadd.f32 %v508, %v366
  %v510 = vadd.f32 %v509, %v368
  %v511 = vadd.f32 %v510, %v371
  %v512 = vadd.f32 %v511, %v373
  %v513 = vadd.f32 %v512, %v376
  %v514 = vadd.f32 %v513, %v378
  %v515 = vadd.f32 %v514, %v381
  %v516 = vadd.f32 %v515, %v383
  %v517 = vadd.f32 %v516, %v386
  %v518 = vadd.f32 %v517, %v388
  %v519 = vadd.f32 %v518, %v391
  %v520 = vadd.f32 %v519, %v393
  %v521 = vadd.f32 %v520, %v396
  %v522 = vadd.f32 %v521, %v398
  %v523 = vadd.f32 %v522, %v401
  %v524 = vadd.f32 %v523, %v403
  %v525 = vadd.f32 %v524, %v406
  %v526 = vadd.f32 %v525, %v408
  %v527 = vadd.f32 %v526, %v411
  %v528 = vadd.f32 %v527, %v413
  %v529 = vadd.f32 %v528, %v416
  %v530 = vadd.f32 %v529, %v418
  %v531 = vadd.f32 %v530, %v421
  %v532 = vadd.f32 %v531, %v423
  %v533 = vadd.f32 %v532, %v426
  %v534 = vadd.f32 %v533, %v428
  %v535 = vadd.f32 %v534, %v431
  %v536 = vadd.f32 %v535, %v433
  %v537 = vadd.f32 %v536, %v436
  %v538 = vadd.f32 %v537, %v438
  %v539 = vadd.f32 %v538, %v441
  %v540 = vadd.f32 %v539, %v443
  %v541 = vadd.f32 %v540, %v446
  %v542 = vadd.f32 %v541, %v448
  %v543 = vadd.f32 %v542, %v451
  %v544 = vadd.f32 %v543, %v453
  %v545 = vadd.f32 %v544, %v456
  %v546 = vadd.f32 %v545, %v458
  %v547 = vadd.f32 %v546, %v461
  %v548 = vadd.f32 %v547, %v463
  %v549 = vadd.f32 %v548, %v466
  %v550 = vadd.f32 %v549, %v468
  %v551 = vadd.f32 %v550, %v471
  %v552 = vadd.f32 %v551, %v473
  %v553 = vadd.f32 %v552, %v476
  %v554 = vadd.f32 %v553, %v478
  %v555 = vadd.f32 %v554, %v481
  %v556 = vadd.f32 %v555, %v483
  %v557 = vadd.f32 %v556, %v486
  %v558 = vadd.f32 %v557, %v488
  %v559 = vadd.f32 %v558, %v491
  %v560 = vadd.f32 %v559, %v493
  %v561 = vadd.f32 %v560, %v496
  %v562 = vadd.f32 %v561, %v498
  %v563 = vrot.slane %v562, 4
  %v564 = vadd.f32 %v562, %v563
  %v565 = vrot.slane %v564, 2
  %v566 = vadd.f32 %v564, %v565
  %v567 = vrot.slane %v566, 1
  %v568 = vadd.f32 %v566, %v567
  %569 = vst [vmem:[%s2] sm:$0x1] %v568
  %v570 = vmul.f32 %v341, %v341
  %v571 = vmul.f32 %v343, %v343
  %v572 = vmul.f32 %v346, %v346
  %v573 = vmul.f32 %v348, %v348
  %v574 = vmul.f32 %v351, %v351
  %v575 = vmul.f32 %v353, %v353
  %v576 = vmul.f32 %v356, %v356
  %v577 = vmul.f32 %v358, %v358
  %v578 = vmul.f32 %v361, %v361
  %v579 = vmul.f32 %v363, %v363
  %v580 = vmul.f32 %v366, %v366
  %v581 = vmul.f32 %v368, %v368
  %v582 = vmul.f32 %v371, %v371
  %v583 = vmul.f32 %v373, %v373
  %v584 = vmul.f32 %v376, %v376
  %v585 = vmul.f32 %v378, %v378
  %v586 = vmul.f32 %v381, %v381
  %v587 = vmul.f32 %v383, %v383
  %v588 = vmul.f32 %v386, %v386
  %v589 = vmul.f32 %v388, %v388
  %v590 = vmul.f32 %v391, %v391
  %v591 = vmul.f32 %v393, %v393
  %v592 = vmul.f32 %v396, %v396
  %v593 = vmul.f32 %v398, %v398
  %v594 = vmul.f32 %v401, %v401
  %v595 = vmul.f32 %v403, %v403
  %v596 = vmul.f32 %v406, %v406
  %v597 = vmul.f32 %v408, %v408
  %v598 = vmul.f32 %v411, %v411
  %v599 = vmul.f32 %v413, %v413
  %v600 = vmul.f32 %v416, %v416
  %v601 = vmul.f32 %v418, %v418
  %v602 = vmul.f32 %v421, %v421
  %v603 = vmul.f32 %v423, %v423
  %v604 = vmul.f32 %v426, %v426
  %v605 = vmul.f32 %v428, %v428
  %v606 = vmul.f32 %v431, %v431
  %v607 = vmul.f32 %v433, %v433
  %v608 = vmul.f32 %v436, %v436
  %v609 = vmul.f32 %v438, %v438
  %v610 = vmul.f32 %v441, %v441
  %v611 = vmul.f32 %v443, %v443
  %v612 = vmul.f32 %v446, %v446
  %v613 = vmul.f32 %v448, %v448
  %v614 = vmul.f32 %v451, %v451
  %v615 = vmul.f32 %v453, %v453
  %v616 = vmul.f32 %v456, %v456
  %v617 = vmul.f32 %v458, %v458
  %v618 = vmul.f32 %v461, %v461
  %v619 = vmul.f32 %v463, %v463
  %v620 = vmul.f32 %v466, %v466
  %v621 = vmul.f32 %v468, %v468
  %v622 = vmul.f32 %v471, %v471
  %v623 = vmul.f32 %v473, %v473
  %v624 = vmul.f32 %v476, %v476
  %v625 = vmul.f32 %v478, %v478
  %v626 = vmul.f32 %v481, %v481
  %v627 = vmul.f32 %v483, %v483
  %v628 = vmul.f32 %v486, %v486
  %v629 = vmul.f32 %v488, %v488
  %v630 = vmul.f32 %v491, %v491
  %v631 = vmul.f32 %v493, %v493
  %v632 = vmul.f32 %v496, %v496
  %v633 = vmul.f32 %v498, %v498
  %v634 = vadd.f32 %v570, %v571
  %v635 = vadd.f32 %v634, %v572
  %v636 = vadd.f32 %v635, %v573
  %v637 = vadd.f32 %v636, %v574
  %v638 = vadd.f32 %v637, %v575
  %v639 = vadd.f32 %v638, %v576
  %v640 = vadd.f32 %v639, %v577
  %v641 = vadd.f32 %v640, %v578
  %v642 = vadd.f32 %v641, %v579
  %v643 = vadd.f32 %v642, %v580
  %v644 = vadd.f32 %v643, %v581
  %v645 = vadd.f32 %v644, %v582
  %v646 = vadd.f32 %v645, %v583
  %v647 = vadd.f32 %v646, %v584
  %v648 = vadd.f32 %v647, %v585
  %v649 = vadd.f32 %v648, %v586
  %v650 = vadd.f32 %v649, %v587
  %v651 = vadd.f32 %v650, %v588
  %v652 = vadd.f32 %v651, %v589
  %v653 = vadd.f32 %v652, %v590
  %v654 = vadd.f32 %v653, %v591
  %v655 = vadd.f32 %v654, %v592
  %v656 = vadd.f32 %v655, %v593
  %v657 = vadd.f32 %v656, %v594
  %v658 = vadd.f32 %v657, %v595
  %v659 = vadd.f32 %v658, %v596
  %v660 = vadd.f32 %v659, %v597
  %v661 = vadd.f32 %v660, %v598
  %v662 = vadd.f32 %v661, %v599
  %v663 = vadd.f32 %v662, %v600
  %v664 = vadd.f32 %v663, %v601
  %v665 = vadd.f32 %v664, %v602
  %v666 = vadd.f32 %v665, %v603
  %v667 = vadd.f32 %v666, %v604
  %v668 = vadd.f32 %v667, %v605
  %v669 = vadd.f32 %v668, %v606
  %v670 = vadd.f32 %v669, %v607
  %v671 = vadd.f32 %v670, %v608
  %v672 = vadd.f32 %v671, %v609
  %v673 = vadd.f32 %v672, %v610
  %v674 = vadd.f32 %v673, %v611
  %v675 = vadd.f32 %v674, %v612
  %v676 = vadd.f32 %v675, %v613
  %v677 = vadd.f32 %v676, %v614
  %v678 = vadd.f32 %v677, %v615
  %v679 = vadd.f32 %v678, %v616
  %v680 = vadd.f32 %v679, %v617
  %v681 = vadd.f32 %v680, %v618
  %v682 = vadd.f32 %v681, %v619
  %v683 = vadd.f32 %v682, %v620
  %v684 = vadd.f32 %v683, %v621
  %v685 = vadd.f32 %v684, %v622
  %v686 = vadd.f32 %v685, %v623
  %v687 = vadd.f32 %v686, %v624
  %v688 = vadd.f32 %v687, %v625
  %v689 = vadd.f32 %v688, %v626
  %v690 = vadd.f32 %v689, %v627
  %v691 = vadd.f32 %v690, %v628
  %v692 = vadd.f32 %v691, %v629
  %v693 = vadd.f32 %v692, %v630
  %v694 = vadd.f32 %v693, %v631
  %v695 = vadd.f32 %v694, %v632
  %v696 = vadd.f32 %v695, %v633
  %v697 = vrot.slane %v696, 4
  %v698 = vadd.f32 %v696, %v697
  %v699 = vrot.slane %v698, 2
  %v700 = vadd.f32 %v698, %v699
  %v701 = vrot.slane %v700, 1
  %v702 = vadd.f32 %v700, %v701
  %703 = vst [vmem:[%s2 + $0x1] sm:$0x1] %v702
  // Predicated region
  $region10: #{layer_cnn_forward.2} parent=0 // pred_check
    _
  $region11: #{layer_cnn_forward.2} parent=0 // pred_check_branch
    %705 = sbr.rel (0) target = $region13
  $region12: #{layer_cnn_forward.2} parent=0 // pred_region
    _
  $region13: #{layer_cnn_forward.2} parent=0 // pred_fallthru
    _
  // Predicated region
  $region14: #{layer_cnn_forward.2} parent=0 // pred_check
    _
  $region15: #{layer_cnn_forward.2} parent=0 // pred_check_branch
    %707 = sbr.rel (0) target = $region17
  $region16: #{layer_cnn_forward.2} parent=0 // pred_region
    _
  $region17: #{layer_cnn_forward.2} parent=0 // pred_fallthru
    _

// kernel: layer_cnn_forward.3
$region0: #{layer_cnn_forward.3}
  #allocation0 [shape = 'u32[]', space=smem, size = 0x4, offset = 0x4, fixed_abs, tag = 'smem constant byte address 0x4 - core index']
  #allocation1 [shape = 'u32[72,128]{1,0:T(1,128)}', space=vmem, size = 0x9000, scoped, tag = 'internal scratch']
  %s0 = inlined_call_operand.vmem [shape: bf16[4,128,128], index: 0, kind: input, shape index: {}]
  %s1 = inlined_call_operand.vmem [shape: bf16[128,128], index: 1, kind: input, shape index: {}]
  %s2 = inlined_call_operand.vmem [shape: f32[2,128], index: 2, kind: input, shape index: {}]
  %s3 = inlined_call_operand.vmem [shape: f32[128,128], index: 3, kind: output, shape index: {}]
  %s4 = sld [smem:[#allocation0]]
  $region22: #{layer_cnn_forward.3} parent=0
    _
  %s6 = ssub.s32 1, %s4
  %s7 = scalar_select 0, %s6, %s4
  // Predicated region
  $region2: #{layer_cnn_forward.3} parent=0 // pred_check
    _
  $region3: #{layer_cnn_forward.3} parent=0 // pred_check_branch
    %9 = sbr.rel (0) target = $region5
  $region4: #{layer_cnn_forward.3} parent=0 // pred_region
    _
  $region5: #{layer_cnn_forward.3} parent=0 // pred_fallthru
    _
  // Predicated region
  $region6: #{layer_cnn_forward.3} parent=0 // pred_check
    _
  $region7: #{layer_cnn_forward.3} parent=0 // pred_check_branch
    %11 = sbr.rel (0) target = $region9
  $region8: #{layer_cnn_forward.3} parent=0 // pred_region
    _
  $region9: #{layer_cnn_forward.3} parent=0 // pred_fallthru
    _
  // Predicated region
  $region10: #{layer_cnn_forward.3} parent=0 // pred_check
    _
  $region11: #{layer_cnn_forward.3} parent=0 // pred_check_branch
    %13 = sbr.rel (0) target = $region13
  $region12: #{layer_cnn_forward.3} parent=0 // pred_region
    _
  $region13: #{layer_cnn_forward.3} parent=0 // pred_fallthru
    _
  %v14 = vld [vmem:[%s2] sm:$0x1]
  %v15 = vld [vmem:[%s2 + $0x1] sm:$0x1]
  %v16 = vld [vmem:[%s1] sm:$0xf]
  %v17 = vld [vmem:[%s1 + $0x4] sm:$0xf]
  %v18 = vld [vmem:[%s1 + $0x8] sm:$0xf]
  %v19 = vld [vmem:[%s1 + $0xc] sm:$0xf]
  %v20 = vld [vmem:[%s1 + $0x10] sm:$0xf]
  %v21 = vld [vmem:[%s1 + $0x14] sm:$0xf]
  %v22 = vld [vmem:[%s1 + $0x18] sm:$0xf]
  %v23 = vld [vmem:[%s1 + $0x1c] sm:$0xf]
  %v24 = vld [vmem:[%s1 + $0x20] sm:$0xf]
  %v25 = vld [vmem:[%s1 + $0x24] sm:$0xf]
  %v26 = vld [vmem:[%s1 + $0x28] sm:$0xf]
  %v27 = vld [vmem:[%s1 + $0x2c] sm:$0xf]
  %v28 = vld [vmem:[%s1 + $0x30] sm:$0xf]
  %v29 = vld [vmem:[%s1 + $0x34] sm:$0xf]
  %v30 = vld [vmem:[%s1 + $0x38] sm:$0xf]
  %v31 = vld [vmem:[%s1 + $0x3c] sm:$0xf]
  %v32 = vld [vmem:[%s0] sm:$0xf]
  %v33 = vld [vmem:[%s0 + $0x4] sm:$0xf]
  %v34 = vld [vmem:[%s0 + $0x8] sm:$0xf]
  %v35 = vld [vmem:[%s0 + $0xc] sm:$0xf]
  %v36 = vld [vmem:[%s0 + $0x10] sm:$0xf]
  %v37 = vld [vmem:[%s0 + $0x14] sm:$0xf]
  %v38 = vld [vmem:[%s0 + $0x18] sm:$0xf]
  %v39 = vld [vmem:[%s0 + $0x1c] sm:$0xf]
  %v40 = vld [vmem:[%s0 + $0x20] sm:$0xf]
  %v41 = vld [vmem:[%s0 + $0x24] sm:$0xf]
  %v42 = vld [vmem:[%s0 + $0x28] sm:$0xf]
  %v43 = vld [vmem:[%s0 + $0x2c] sm:$0xf]
  %v44 = vld [vmem:[%s0 + $0x30] sm:$0xf]
  %v45 = vld [vmem:[%s0 + $0x34] sm:$0xf]
  %v46 = vld [vmem:[%s0 + $0x38] sm:$0xf]
  %v47 = vld [vmem:[%s0 + $0x3c] sm:$0xf]
  %v64 = vunpack.c.l.b16 %v32
  %v65 = vunpack.c.l.b16 %v33
  %v66 = vunpack.c.l.b16 %v34
  %v67 = vunpack.c.l.b16 %v35
  %v68 = vunpack.c.l.b16 %v36
  %v69 = vunpack.c.l.b16 %v37
  %v70 = vunpack.c.l.b16 %v38
  %v71 = vunpack.c.l.b16 %v39
  %v72 = vunpack.c.l.b16 %v40
  %v73 = vunpack.c.l.b16 %v41
  %v74 = vunpack.c.l.b16 %v42
  %v75 = vunpack.c.l.b16 %v43
  %v76 = vunpack.c.l.b16 %v44
  %v77 = vunpack.c.l.b16 %v45
  %v78 = vunpack.c.l.b16 %v46
  %v79 = vunpack.c.l.b16 %v47
  %v80 = vpack.c.b16 %v65, %v64
  %v81 = vpack.c.b16 %v67, %v66
  %v82 = vpack.c.b16 %v69, %v68
  %v83 = vpack.c.b16 %v71, %v70
  %v84 = vpack.c.b16 %v73, %v72
  %v85 = vpack.c.b16 %v75, %v74
  %v86 = vpack.c.b16 %v77, %v76
  %v87 = vpack.c.b16 %v79, %v78
  %v112 = vunpack.c.l.b16 %v16
  %v113 = vunpack.c.l.b16 %v17
  %v114 = vunpack.c.l.b16 %v18
  %v115 = vunpack.c.l.b16 %v19
  %v116 = vunpack.c.l.b16 %v20
  %v117 = vunpack.c.l.b16 %v21
  %v118 = vunpack.c.l.b16 %v22
  %v119 = vunpack.c.l.b16 %v23
  %v120 = vunpack.c.l.b16 %v24
  %v121 = vunpack.c.l.b16 %v25
  %v122 = vunpack.c.l.b16 %v26
  %v123 = vunpack.c.l.b16 %v27
  %v124 = vunpack.c.l.b16 %v28
  %v125 = vunpack.c.l.b16 %v29
  %v126 = vunpack.c.l.b16 %v30
  %v127 = vunpack.c.l.b16 %v31
  %v128 = vpack.c.b16 %v113, %v112
  %v129 = vpack.c.b16 %v115, %v114
  %v130 = vpack.c.b16 %v117, %v116
  %v131 = vpack.c.b16 %v119, %v118
  %v132 = vpack.c.b16 %v121, %v120
  %v133 = vpack.c.b16 %v123, %v122
  %v134 = vpack.c.b16 %v125, %v124
  %v135 = vpack.c.b16 %v127, %v126
  %144 = vmatpush.bf16.msra.mxu0 %v135
  %145 = vmatpush.bf16.msra.mxu0 %v134
  %146 = vmatpush.bf16.msra.mxu0 %v133
  %147 = vmatpush.bf16.msra.mxu0 %v132
  %148 = vmatpush.bf16.msra.mxu0 %v131
  %149 = vmatpush.bf16.msra.mxu0 %v130
  %150 = vmatpush.bf16.msra.mxu0 %v129
  %151 = vmatpush.bf16.msra.mxu0 %v128
  %152 = vmatmul.bf16.gmra.mxu0 %v80
  %v153 = vpop.f32.mrf.mxu0
  %v154 = vadd.f32 0.0, %v153
  %v155 = vpop.f32.mrf.mxu0
  %v156 = vadd.f32 0.0, %v155
  %157 = vmatmul.bf16.gmra.mxu0 %v81
  %v158 = vpop.f32.mrf.mxu0
  %v159 = vadd.f32 0.0, %v158
  %v160 = vpop.f32.mrf.mxu0
  %v161 = vadd.f32 0.0, %v160
  %162 = vmatmul.bf16.gmra.mxu0 %v82
  %v163 = vpop.f32.mrf.mxu0
  %v164 = vadd.f32 0.0, %v163
  %v165 = vpop.f32.mrf.mxu0
  %v166 = vadd.f32 0.0, %v165
  %167 = vmatmul.bf16.gmra.mxu0 %v83
  %v168 = vpop.f32.mrf.mxu0
  %v169 = vadd.f32 0.0, %v168
  %v170 = vpop.f32.mrf.mxu0
  %v171 = vadd.f32 0.0, %v170
  %172 = vmatmul.bf16.gmra.mxu0 %v84
  %v173 = vpop.f32.mrf.mxu0
  %v174 = vadd.f32 0.0, %v173
  %v175 = vpop.f32.mrf.mxu0
  %v176 = vadd.f32 0.0, %v175
  %177 = vmatmul.bf16.gmra.mxu0 %v85
  %v178 = vpop.f32.mrf.mxu0
  %v179 = vadd.f32 0.0, %v178
  %v180 = vpop.f32.mrf.mxu0
  %v181 = vadd.f32 0.0, %v180
  %182 = vmatmul.bf16.gmra.mxu0 %v86
  %v183 = vpop.f32.mrf.mxu0
  %v184 = vadd.f32 0.0, %v183
  %v185 = vpop.f32.mrf.mxu0
  %v186 = vadd.f32 0.0, %v185
  %187 = vmatmul.bf16.gmra.mxu0 %v87
  %v188 = vpop.f32.mrf.mxu0
  %v189 = vadd.f32 0.0, %v188
  %v190 = vpop.f32.mrf.mxu0
  %v191 = vadd.f32 0.0, %v190
  %192 = vdwg.mxu0
  %v193 = vperm.slane %v14, 0
  %v194 = vmul.f32 %v154, %v193
  %v195 = vmul.f32 %v156, %v193
  %v196 = vmul.f32 %v159, %v193
  %v197 = vmul.f32 %v161, %v193
  %v198 = vmul.f32 %v164, %v193
  %v199 = vmul.f32 %v166, %v193
  %v200 = vmul.f32 %v169, %v193
  %v201 = vmul.f32 %v171, %v193
  %v202 = vmul.f32 %v174, %v193
  %v203 = vmul.f32 %v176, %v193
  %v204 = vmul.f32 %v179, %v193
  %v205 = vmul.f32 %v181, %v193
  %v206 = vmul.f32 %v184, %v193
  %v207 = vmul.f32 %v186, %v193
  %v208 = vmul.f32 %v189, %v193
  %v209 = vmul.f32 %v191, %v193
  %v210 = vperm.slane %v15, 0
  %v211 = vadd.f32 %v194, %v210
  %v212 = vadd.f32 %v195, %v210
  %v213 = vadd.f32 %v196, %v210
  %v214 = vadd.f32 %v197, %v210
  %v215 = vadd.f32 %v198, %v210
  %v216 = vadd.f32 %v199, %v210
  %v217 = vadd.f32 %v200, %v210
  %v218 = vadd.f32 %v201, %v210
  %v219 = vadd.f32 %v202, %v210
  %v220 = vadd.f32 %v203, %v210
  %v221 = vadd.f32 %v204, %v210
  %v222 = vadd.f32 %v205, %v210
  %v223 = vadd.f32 %v206, %v210
  %v224 = vadd.f32 %v207, %v210
  %v225 = vadd.f32 %v208, %v210
  %v226 = vadd.f32 %v209, %v210
  %v227 = vmax.f32 %v211, 0.0
  %v228 = vmax.f32 %v212, 0.0
  %v229 = vmax.f32 %v213, 0.0
  %v230 = vmax.f32 %v214, 0.0
  %v231 = vmax.f32 %v215, 0.0
  %v232 = vmax.f32 %v216, 0.0
  %v233 = vmax.f32 %v217, 0.0
  %v234 = vmax.f32 %v218, 0.0
  %v235 = vmax.f32 %v219, 0.0
  %v236 = vmax.f32 %v220, 0.0
  %v237 = vmax.f32 %v221, 0.0
  %v238 = vmax.f32 %v222, 0.0
  %v239 = vmax.f32 %v223, 0.0
  %v240 = vmax.f32 %v224, 0.0
  %v241 = vmax.f32 %v225, 0.0
  %v242 = vmax.f32 %v226, 0.0
  %s243 = scalar_lea.vmem %s0, 64
  %v244 = vld [vmem:[%s243] sm:$0xf]
  %v245 = vld [vmem:[%s243 + $0x4] sm:$0xf]
  %v246 = vld [vmem:[%s243 + $0x8] sm:$0xf]
  %v247 = vld [vmem:[%s243 + $0xc] sm:$0xf]
  %v248 = vld [vmem:[%s243 + $0x10] sm:$0xf]
  %v249 = vld [vmem:[%s243 + $0x14] sm:$0xf]
  %v250 = vld [vmem:[%s243 + $0x18] sm:$0xf]
  %v251 = vld [vmem:[%s243 + $0x1c] sm:$0xf]
  %v252 = vld [vmem:[%s243 + $0x20] sm:$0xf]
  %v253 = vld [vmem:[%s243 + $0x24] sm:$0xf]
  %v254 = vld [vmem:[%s243 + $0x28] sm:$0xf]
  %v255 = vld [vmem:[%s243 + $0x2c] sm:$0xf]
  %v256 = vld [vmem:[%s243 + $0x30] sm:$0xf]
  %v257 = vld [vmem:[%s243 + $0x34] sm:$0xf]
  %v258 = vld [vmem:[%s243 + $0x38] sm:$0xf]
  %v259 = vld [vmem:[%s243 + $0x3c] sm:$0xf]
  %v276 = vunpack.c.l.b16 %v244
  %v277 = vunpack.c.l.b16 %v245
  %v278 = vunpack.c.l.b16 %v246
  %v279 = vunpack.c.l.b16 %v247
  %v280 = vunpack.c.l.b16 %v248
  %v281 = vunpack.c.l.b16 %v249
  %v282 = vunpack.c.l.b16 %v250
  %v283 = vunpack.c.l.b16 %v251
  %v284 = vunpack.c.l.b16 %v252
  %v285 = vunpack.c.l.b16 %v253
  %v286 = vunpack.c.l.b16 %v254
  %v287 = vunpack.c.l.b16 %v255
  %v288 = vunpack.c.l.b16 %v256
  %v289 = vunpack.c.l.b16 %v257
  %v290 = vunpack.c.l.b16 %v258
  %v291 = vunpack.c.l.b16 %v259
  %v292 = vpack.c.b16 %v277, %v276
  %v293 = vpack.c.b16 %v279, %v278
  %v294 = vpack.c.b16 %v281, %v280
  %v295 = vpack.c.b16 %v283, %v282
  %v296 = vpack.c.b16 %v285, %v284
  %v297 = vpack.c.b16 %v287, %v286
  %v298 = vpack.c.b16 %v289, %v288
  %v299 = vpack.c.b16 %v291, %v290
  %308 = vmatpush.bf16.msra.mxu0 %v135
  %309 = vmatpush.bf16.msra.mxu0 %v134
  %310 = vmatpush.bf16.msra.mxu0 %v133
  %311 = vmatpush.bf16.msra.mxu0 %v132
  %312 = vmatpush.bf16.msra.mxu0 %v131
  %313 = vmatpush.bf16.msra.mxu0 %v130
  %314 = vmatpush.bf16.msra.mxu0 %v129
  %315 = vmatpush.bf16.msra.mxu0 %v128
  %316 = vmatmul.bf16.gmra.mxu0 %v292
  %v317 = vpop.f32.mrf.mxu0
  %v318 = vadd.f32 0.0, %v317
  %v319 = vpop.f32.mrf.mxu0
  %v320 = vadd.f32 0.0, %v319
  %321 = vmatmul.bf16.gmra.mxu0 %v293
  %v322 = vpop.f32.mrf.mxu0
  %v323 = vadd.f32 0.0, %v322
  %v324 = vpop.f32.mrf.mxu0
  %v325 = vadd.f32 0.0, %v324
  %326 = vmatmul.bf16.gmra.mxu0 %v294
  %v327 = vpop.f32.mrf.mxu0
  %v328 = vadd.f32 0.0, %v327
  %v329 = vpop.f32.mrf.mxu0
  %v330 = vadd.f32 0.0, %v329
  %331 = vmatmul.bf16.gmra.mxu0 %v295
  %v332 = vpop.f32.mrf.mxu0
  %v333 = vadd.f32 0.0, %v332
  %v334 = vpop.f32.mrf.mxu0
  %v335 = vadd.f32 0.0, %v334
  %336 = vmatmul.bf16.gmra.mxu0 %v296
  %v337 = vpop.f32.mrf.mxu0
  %v338 = vadd.f32 0.0, %v337
  %v339 = vpop.f32.mrf.mxu0
  %v340 = vadd.f32 0.0, %v339
  %341 = vmatmul.bf16.gmra.mxu0 %v297
  %v342 = vpop.f32.mrf.mxu0
  %v343 = vadd.f32 0.0, %v342
  %v344 = vpop.f32.mrf.mxu0
  %v345 = vadd.f32 0.0, %v344
  %346 = vmatmul.bf16.gmra.mxu0 %v298
  %v347 = vpop.f32.mrf.mxu0
  %v348 = vadd.f32 0.0, %v347
  %v349 = vpop.f32.mrf.mxu0
  %v350 = vadd.f32 0.0, %v349
  %351 = vmatmul.bf16.gmra.mxu0 %v299
  %v352 = vpop.f32.mrf.mxu0
  %v353 = vadd.f32 0.0, %v352
  %v354 = vpop.f32.mrf.mxu0
  %v355 = vadd.f32 0.0, %v354
  %356 = vdwg.mxu0
  %v357 = vmul.f32 %v318, %v193
  %v358 = vmul.f32 %v320, %v193
  %v359 = vmul.f32 %v323, %v193
  %v360 = vmul.f32 %v325, %v193
  %v361 = vmul.f32 %v328, %v193
  %v362 = vmul.f32 %v330, %v193
  %v363 = vmul.f32 %v333, %v193
  %v364 = vmul.f32 %v335, %v193
  %v365 = vmul.f32 %v338, %v193
  %v366 = vmul.f32 %v340, %v193
  %v367 = vmul.f32 %v343, %v193
  %v368 = vmul.f32 %v345, %v193
  %v369 = vmul.f32 %v348, %v193
  %v370 = vmul.f32 %v350, %v193
  %v371 = vmul.f32 %v353, %v193
  %v372 = vmul.f32 %v355, %v193
  %v373 = vadd.f32 %v357, %v210
  %v374 = vadd.f32 %v358, %v210
  %v375 = vadd.f32 %v359, %v210
  %v376 = vadd.f32 %v360, %v210
  %v377 = vadd.f32 %v361, %v210
  %v378 = vadd.f32 %v362, %v210
  %v379 = vadd.f32 %v363, %v210
  %v380 = vadd.f32 %v364, %v210
  %v381 = vadd.f32 %v365, %v210
  %v382 = vadd.f32 %v366, %v210
  %v383 = vadd.f32 %v367, %v210
  %v384 = vadd.f32 %v368, %v210
  %v385 = vadd.f32 %v369, %v210
  %v386 = vadd.f32 %v370, %v210
  %v387 = vadd.f32 %v371, %v210
  %v388 = vadd.f32 %v372, %v210
  %v389 = vmax.f32 %v373, 0.0
  %v390 = vmax.f32 %v374, 0.0
  %v391 = vmax.f32 %v375, 0.0
  %v392 = vmax.f32 %v376, 0.0
  %v393 = vmax.f32 %v377, 0.0
  %v394 = vmax.f32 %v378, 0.0
  %v395 = vmax.f32 %v379, 0.0
  %v396 = vmax.f32 %v380, 0.0
  %v397 = vmax.f32 %v381, 0.0
  %v398 = vmax.f32 %v382, 0.0
  %v399 = vmax.f32 %v383, 0.0
  %v400 = vmax.f32 %v384, 0.0
  %v401 = vmax.f32 %v385, 0.0
  %v402 = vmax.f32 %v386, 0.0
  %v403 = vmax.f32 %v387, 0.0
  %v404 = vmax.f32 %v388, 0.0
  %v405 = vmax.f32 %v227, %v389
  %v406 = vmax.f32 %v228, %v390
  %v407 = vmax.f32 %v229, %v391
  %v408 = vmax.f32 %v230, %v392
  %v409 = vmax.f32 %v231, %v393
  %v410 = vmax.f32 %v232, %v394
  %v411 = vmax.f32 %v233, %v395
  %v412 = vmax.f32 %v234, %v396
  %v413 = vmax.f32 %v235, %v397
  %v414 = vmax.f32 %v236, %v398
  %v415 = vmax.f32 %v237, %v399
  %v416 = vmax.f32 %v238, %v400
  %v417 = vmax.f32 %v239, %v401
  %v418 = vmax.f32 %v240, %v402
  %v419 = vmax.f32 %v241, %v403
  %v420 = vmax.f32 %v242, %v404
  %s421 = scalar_lea.vmem %s0, 128
  %v422 = vld [vmem:[%s421] sm:$0xf]
  %v423 = vld [vmem:[%s421 + $0x4] sm:$0xf]
  %v424 = vld [vmem:[%s421 + $0x8] sm:$0xf]
  %v425 = vld [vmem:[%s421 + $0xc] sm:$0xf]
  %v426 = vld [vmem:[%s421 + $0x10] sm:$0xf]
  %v427 = vld [vmem:[%s421 + $0x14] sm:$0xf]
  %v428 = vld [vmem:[%s421 + $0x18] sm:$0xf]
  %v429 = vld [vmem:[%s421 + $0x1c] sm:$0xf]
  %v430 = vld [vmem:[%s421 + $0x20] sm:$0xf]
  %v431 = vld [vmem:[%s421 + $0x24] sm:$0xf]
  %v432 = vld [vmem:[%s421 + $0x28] sm:$0xf]
  %v433 = vld [vmem:[%s421 + $0x2c] sm:$0xf]
  %v434 = vld [vmem:[%s421 + $0x30] sm:$0xf]
  %v435 = vld [vmem:[%s421 + $0x34] sm:$0xf]
  %v436 = vld [vmem:[%s421 + $0x38] sm:$0xf]
  %v437 = vld [vmem:[%s421 + $0x3c] sm:$0xf]
  %v454 = vunpack.c.l.b16 %v422
  %v455 = vunpack.c.l.b16 %v423
  %v456 = vunpack.c.l.b16 %v424
  %v457 = vunpack.c.l.b16 %v425
  %v458 = vunpack.c.l.b16 %v426
  %v459 = vunpack.c.l.b16 %v427
  %v460 = vunpack.c.l.b16 %v428
  %v461 = vunpack.c.l.b16 %v429
  %v462 = vunpack.c.l.b16 %v430
  %v463 = vunpack.c.l.b16 %v431
  %v464 = vunpack.c.l.b16 %v432
  %v465 = vunpack.c.l.b16 %v433
  %v466 = vunpack.c.l.b16 %v434
  %v467 = vunpack.c.l.b16 %v435
  %v468 = vunpack.c.l.b16 %v436
  %v469 = vunpack.c.l.b16 %v437
  %v470 = vpack.c.b16 %v455, %v454
  %v471 = vpack.c.b16 %v457, %v456
  %v472 = vpack.c.b16 %v459, %v458
  %v473 = vpack.c.b16 %v461, %v460
  %v474 = vpack.c.b16 %v463, %v462
  %v475 = vpack.c.b16 %v465, %v464
  %v476 = vpack.c.b16 %v467, %v466
  %v477 = vpack.c.b16 %v469, %v468
  %486 = vmatpush.bf16.msra.mxu0 %v135
  %487 = vmatpush.bf16.msra.mxu0 %v134
  %488 = vmatpush.bf16.msra.mxu0 %v133
  %489 = vmatpush.bf16.msra.mxu0 %v132
  %490 = vmatpush.bf16.msra.mxu0 %v131
  %491 = vmatpush.bf16.msra.mxu0 %v130
  %492 = vmatpush.bf16.msra.mxu0 %v129
  %493 = vmatpush.bf16.msra.mxu0 %v128
  %494 = vmatmul.bf16.gmra.mxu0 %v470
  %v495 = vpop.f32.mrf.mxu0
  %v496 = vadd.f32 0.0, %v495
  %v497 = vpop.f32.mrf.mxu0
  %v498 = vadd.f32 0.0, %v497
  %499 = vmatmul.bf16.gmra.mxu0 %v471
  %v500 = vpop.f32.mrf.mxu0
  %v501 = vadd.f32 0.0, %v500
  %v502 = vpop.f32.mrf.mxu0
  %v503 = vadd.f32 0.0, %v502
  %504 = vmatmul.bf16.gmra.mxu0 %v472
  %v505 = vpop.f32.mrf.mxu0
  %v506 = vadd.f32 0.0, %v505
  %v507 = vpop.f32.mrf.mxu0
  %v508 = vadd.f32 0.0, %v507
  %509 = vmatmul.bf16.gmra.mxu0 %v473
  %v510 = vpop.f32.mrf.mxu0
  %v511 = vadd.f32 0.0, %v510
  %v512 = vpop.f32.mrf.mxu0
  %v513 = vadd.f32 0.0, %v512
  %514 = vmatmul.bf16.gmra.mxu0 %v474
  %v515 = vpop.f32.mrf.mxu0
  %v516 = vadd.f32 0.0, %v515
  %v517 = vpop.f32.mrf.mxu0
  %v518 = vadd.f32 0.0, %v517
  %519 = vmatmul.bf16.gmra.mxu0 %v475
  %v520 = vpop.f32.mrf.mxu0
  %v521 = vadd.f32 0.0, %v520
  %v522 = vpop.f32.mrf.mxu0
  %v523 = vadd.f32 0.0, %v522
  %524 = vmatmul.bf16.gmra.mxu0 %v476
  %v525 = vpop.f32.mrf.mxu0
  %v526 = vadd.f32 0.0, %v525
  %v527 = vpop.f32.mrf.mxu0
  %v528 = vadd.f32 0.0, %v527
  %529 = vmatmul.bf16.gmra.mxu0 %v477
  %v530 = vpop.f32.mrf.mxu0
  %v531 = vadd.f32 0.0, %v530
  %v532 = vpop.f32.mrf.mxu0
  %v533 = vadd.f32 0.0, %v532
  %534 = vdwg.mxu0
  %v535 = vmul.f32 %v496, %v193
  %v536 = vmul.f32 %v498, %v193
  %v537 = vmul.f32 %v501, %v193
  %v538 = vmul.f32 %v503, %v193
  %v539 = vmul.f32 %v506, %v193
  %v540 = vmul.f32 %v508, %v193
  %v541 = vmul.f32 %v511, %v193
  %v542 = vmul.f32 %v513, %v193
  %v543 = vmul.f32 %v516, %v193
  %v544 = vmul.f32 %v518, %v193
  %v545 = vmul.f32 %v521, %v193
  %v546 = vmul.f32 %v523, %v193
  %v547 = vmul.f32 %v526, %v193
  %v548 = vmul.f32 %v528, %v193
  %v549 = vmul.f32 %v531, %v193
  %v550 = vmul.f32 %v533, %v193
  %v551 = vadd.f32 %v535, %v210
  %v552 = vadd.f32 %v536, %v210
  %v553 = vadd.f32 %v537, %v210
  %v554 = vadd.f32 %v538, %v210
  %v555 = vadd.f32 %v539, %v210
  %v556 = vadd.f32 %v540, %v210
  %v557 = vadd.f32 %v541, %v210
  %v558 = vadd.f32 %v542, %v210
  %v559 = vadd.f32 %v543, %v210
  %v560 = vadd.f32 %v544, %v210
  %v561 = vadd.f32 %v545, %v210
  %v562 = vadd.f32 %v546, %v210
  %v563 = vadd.f32 %v547, %v210
  %v564 = vadd.f32 %v548, %v210
  %v565 = vadd.f32 %v549, %v210
  %v566 = vadd.f32 %v550, %v210
  %v567 = vmax.f32 %v551, 0.0
  %v568 = vmax.f32 %v552, 0.0
  %v569 = vmax.f32 %v553, 0.0
  %v570 = vmax.f32 %v554, 0.0
  %v571 = vmax.f32 %v555, 0.0
  %v572 = vmax.f32 %v556, 0.0
  %v573 = vmax.f32 %v557, 0.0
  %v574 = vmax.f32 %v558, 0.0
  %v575 = vmax.f32 %v559, 0.0
  %v576 = vmax.f32 %v560, 0.0
  %v577 = vmax.f32 %v561, 0.0
  %v578 = vmax.f32 %v562, 0.0
  %v579 = vmax.f32 %v563, 0.0
  %v580 = vmax.f32 %v564, 0.0
  %v581 = vmax.f32 %v565, 0.0
  %v582 = vmax.f32 %v566, 0.0
  %s583 = scalar_lea.vmem %s0, 192
  %v584 = vld [vmem:[%s583] sm:$0xf]
  %v585 = vld [vmem:[%s583 + $0x4] sm:$0xf]
  %v586 = vld [vmem:[%s583 + $0x8] sm:$0xf]
  %v587 = vld [vmem:[%s583 + $0xc] sm:$0xf]
  %v588 = vld [vmem:[%s583 + $0x10] sm:$0xf]
  %v589 = vld [vmem:[%s583 + $0x14] sm:$0xf]
  %v590 = vld [vmem:[%s583 + $0x18] sm:$0xf]
  %v591 = vld [vmem:[%s583 + $0x1c] sm:$0xf]
  %v592 = vld [vmem:[%s583 + $0x20] sm:$0xf]
  %v593 = vld [vmem:[%s583 + $0x24] sm:$0xf]
  %v594 = vld [vmem:[%s583 + $0x28] sm:$0xf]
  %v595 = vld [vmem:[%s583 + $0x2c] sm:$0xf]
  %v596 = vld [vmem:[%s583 + $0x30] sm:$0xf]
  %v597 = vld [vmem:[%s583 + $0x34] sm:$0xf]
  %v598 = vld [vmem:[%s583 + $0x38] sm:$0xf]
  %v599 = vld [vmem:[%s583 + $0x3c] sm:$0xf]
  %v616 = vunpack.c.l.b16 %v584
  %v617 = vunpack.c.l.b16 %v585
  %v618 = vunpack.c.l.b16 %v586
  %v619 = vunpack.c.l.b16 %v587
  %v620 = vunpack.c.l.b16 %v588
  %v621 = vunpack.c.l.b16 %v589
  %v622 = vunpack.c.l.b16 %v590
  %v623 = vunpack.c.l.b16 %v591
  %v624 = vunpack.c.l.b16 %v592
  %v625 = vunpack.c.l.b16 %v593
  %v626 = vunpack.c.l.b16 %v594
  %v627 = vunpack.c.l.b16 %v595
  %v628 = vunpack.c.l.b16 %v596
  %v629 = vunpack.c.l.b16 %v597
  %v630 = vunpack.c.l.b16 %v598
  %v631 = vunpack.c.l.b16 %v599
  %v632 = vpack.c.b16 %v617, %v616
  %v633 = vpack.c.b16 %v619, %v618
  %v634 = vpack.c.b16 %v621, %v620
  %v635 = vpack.c.b16 %v623, %v622
  %v636 = vpack.c.b16 %v625, %v624
  %v637 = vpack.c.b16 %v627, %v626
  %v638 = vpack.c.b16 %v629, %v628
  %v639 = vpack.c.b16 %v631, %v630
  %648 = vmatpush.bf16.msra.mxu0 %v135
  %649 = vmatpush.bf16.msra.mxu0 %v134
  %650 = vmatpush.bf16.msra.mxu0 %v133
  %651 = vmatpush.bf16.msra.mxu0 %v132
  %652 = vmatpush.bf16.msra.mxu0 %v131
  %653 = vmatpush.bf16.msra.mxu0 %v130
  %654 = vmatpush.bf16.msra.mxu0 %v129
  %655 = vmatpush.bf16.msra.mxu0 %v128
  %656 = vmatmul.bf16.gmra.mxu0 %v632
  %v657 = vpop.f32.mrf.mxu0
  %v658 = vadd.f32 0.0, %v657
  %v659 = vpop.f32.mrf.mxu0
  %v660 = vadd.f32 0.0, %v659
  %661 = vmatmul.bf16.gmra.mxu0 %v633
  %v662 = vpop.f32.mrf.mxu0
  %v663 = vadd.f32 0.0, %v662
  %v664 = vpop.f32.mrf.mxu0
  %v665 = vadd.f32 0.0, %v664
  %666 = vmatmul.bf16.gmra.mxu0 %v634
  %v667 = vpop.f32.mrf.mxu0
  %v668 = vadd.f32 0.0, %v667
  %v669 = vpop.f32.mrf.mxu0
  %v670 = vadd.f32 0.0, %v669
  %671 = vmatmul.bf16.gmra.mxu0 %v635
  %v672 = vpop.f32.mrf.mxu0
  %v673 = vadd.f32 0.0, %v672
  %v674 = vpop.f32.mrf.mxu0
  %v675 = vadd.f32 0.0, %v674
  %676 = vmatmul.bf16.gmra.mxu0 %v636
  %v677 = vpop.f32.mrf.mxu0
  %v678 = vadd.f32 0.0, %v677
  %v679 = vpop.f32.mrf.mxu0
  %v680 = vadd.f32 0.0, %v679
  %681 = vmatmul.bf16.gmra.mxu0 %v637
  %v682 = vpop.f32.mrf.mxu0
  %v683 = vadd.f32 0.0, %v682
  %v684 = vpop.f32.mrf.mxu0
  %v685 = vadd.f32 0.0, %v684
  %686 = vmatmul.bf16.gmra.mxu0 %v638
  %v687 = vpop.f32.mrf.mxu0
  %v688 = vadd.f32 0.0, %v687
  %v689 = vpop.f32.mrf.mxu0
  %v690 = vadd.f32 0.0, %v689
  %691 = vmatmul.bf16.gmra.mxu0 %v639
  %v692 = vpop.f32.mrf.mxu0
  %v693 = vadd.f32 0.0, %v692
  %v694 = vpop.f32.mrf.mxu0
  %v695 = vadd.f32 0.0, %v694
  %696 = vdwg.mxu0
  %v697 = vmul.f32 %v658, %v193
  %v698 = vmul.f32 %v660, %v193
  %v699 = vmul.f32 %v663, %v193
  %v700 = vmul.f32 %v665, %v193
  %v701 = vmul.f32 %v668, %v193
  %v702 = vmul.f32 %v670, %v193
  %v703 = vmul.f32 %v673, %v193
  %v704 = vmul.f32 %v675, %v193
  %v705 = vmul.f32 %v678, %v193
  %v706 = vmul.f32 %v680, %v193
  %v707 = vmul.f32 %v683, %v193
  %v708 = vmul.f32 %v685, %v193
  %v709 = vmul.f32 %v688, %v193
  %v710 = vmul.f32 %v690, %v193
  %v711 = vmul.f32 %v693, %v193
  %v712 = vmul.f32 %v695, %v193
  %v713 = vadd.f32 %v697, %v210
  %v714 = vadd.f32 %v698, %v210
  %v715 = vadd.f32 %v699, %v210
  %v716 = vadd.f32 %v700, %v210
  %v717 = vadd.f32 %v701, %v210
  %v718 = vadd.f32 %v702, %v210
  %v719 = vadd.f32 %v703, %v210
  %v720 = vadd.f32 %v704, %v210
  %v721 = vadd.f32 %v705, %v210
  %v722 = vadd.f32 %v706, %v210
  %v723 = vadd.f32 %v707, %v210
  %v724 = vadd.f32 %v708, %v210
  %v725 = vadd.f32 %v709, %v210
  %v726 = vadd.f32 %v710, %v210
  %v727 = vadd.f32 %v711, %v210
  %v728 = vadd.f32 %v712, %v210
  %v729 = vmax.f32 %v713, 0.0
  %v730 = vmax.f32 %v714, 0.0
  %v731 = vmax.f32 %v715, 0.0
  %v732 = vmax.f32 %v716, 0.0
  %v733 = vmax.f32 %v717, 0.0
  %v734 = vmax.f32 %v718, 0.0
  %v735 = vmax.f32 %v719, 0.0
  %v736 = vmax.f32 %v720, 0.0
  %v737 = vmax.f32 %v721, 0.0
  %v738 = vmax.f32 %v722, 0.0
  %v739 = vmax.f32 %v723, 0.0
  %v740 = vmax.f32 %v724, 0.0
  %v741 = vmax.f32 %v725, 0.0
  %v742 = vmax.f32 %v726, 0.0
  %v743 = vmax.f32 %v727, 0.0
  %v744 = vmax.f32 %v728, 0.0
  %v745 = vmax.f32 %v567, %v729
  %v746 = vmax.f32 %v568, %v730
  %v747 = vmax.f32 %v569, %v731
  %v748 = vmax.f32 %v570, %v732
  %v749 = vmax.f32 %v571, %v733
  %v750 = vmax.f32 %v572, %v734
  %v751 = vmax.f32 %v573, %v735
  %v752 = vmax.f32 %v574, %v736
  %v753 = vmax.f32 %v575, %v737
  %v754 = vmax.f32 %v576, %v738
  %v755 = vmax.f32 %v577, %v739
  %v756 = vmax.f32 %v578, %v740
  %v757 = vmax.f32 %v579, %v741
  %v758 = vmax.f32 %v580, %v742
  %v759 = vmax.f32 %v581, %v743
  %v760 = vmax.f32 %v582, %v744
  %v761 = vmax.f32 %v405, %v745
  %v762 = vmax.f32 %v406, %v746
  %v763 = vmax.f32 %v407, %v747
  %v764 = vmax.f32 %v408, %v748
  %v765 = vmax.f32 %v409, %v749
  %v766 = vmax.f32 %v410, %v750
  %v767 = vmax.f32 %v411, %v751
  %v768 = vmax.f32 %v412, %v752
  %v769 = vmax.f32 %v413, %v753
  %v770 = vmax.f32 %v414, %v754
  %v771 = vmax.f32 %v415, %v755
  %v772 = vmax.f32 %v416, %v756
  %v773 = vmax.f32 %v417, %v757
  %v774 = vmax.f32 %v418, %v758
  %v775 = vmax.f32 %v419, %v759
  %v776 = vmax.f32 %v420, %v760
  %777 = vst [vmem:[%s3] sm:$0xff] %v761
  %778 = vst [vmem:[%s3 + $0x8] sm:$0xff] %v762
  %779 = vst [vmem:[%s3 + $0x10] sm:$0xff] %v763
  %780 = vst [vmem:[%s3 + $0x18] sm:$0xff] %v764
  %781 = vst [vmem:[%s3 + $0x20] sm:$0xff] %v765
  %782 = vst [vmem:[%s3 + $0x28] sm:$0xff] %v766
  %783 = vst [vmem:[%s3 + $0x30] sm:$0xff] %v767
  %784 = vst [vmem:[%s3 + $0x38] sm:$0xff] %v768
  %785 = vst [vmem:[%s3 + $0x40] sm:$0xff] %v769
  %786 = vst [vmem:[%s3 + $0x48] sm:$0xff] %v770
  %787 = vst [vmem:[%s3 + $0x50] sm:$0xff] %v771
  %788 = vst [vmem:[%s3 + $0x58] sm:$0xff] %v772
  %789 = vst [vmem:[%s3 + $0x60] sm:$0xff] %v773
  %790 = vst [vmem:[%s3 + $0x68] sm:$0xff] %v774
  %791 = vst [vmem:[%s3 + $0x70] sm:$0xff] %v775
  %792 = vst [vmem:[%s3 + $0x78] sm:$0xff] %v776
  // Predicated region
  $region14: #{layer_cnn_forward.3} parent=0 // pred_check
    _
  $region15: #{layer_cnn_forward.3} parent=0 // pred_check_branch
    %794 = sbr.rel (0) target = $region17
  $region16: #{layer_cnn_forward.3} parent=0 // pred_region
    _
  $region17: #{layer_cnn_forward.3} parent=0 // pred_fallthru
    _
  // Predicated region
  $region18: #{layer_cnn_forward.3} parent=0 // pred_check
    _
  $region19: #{layer_cnn_forward.3} parent=0 // pred_check_branch
    %796 = sbr.rel (0) target = $region21
  $region20: #{layer_cnn_forward.3} parent=0 // pred_region
    _
  $region21: #{layer_cnn_forward.3} parent=0 // pred_fallthru
    _

</llo_original>
